<compile_context>
chip_gen: v5e
topology: v5e:2x2
jax: 0.10.0
libtpu: 0.0.40
codegen_flags: <defaults>
</compile_context>

<pallas_src>
import math
from functools import partial

import jax
import jax.numpy as jnp
from jax.experimental import pallas as pl
from jax.experimental.pallas import tpu as pltpu


def attention_block_kernel(
    x_ref,        # (1, S, E)  f32   full sequence for this batch item
    wq_ref,       # (E, E)     bf16  Wq^T with 1/sqrt(hd) folded in
    wkv_ref,      # (E, 2E)    bf16  [Wk^T | Wv^T] fused
    bq_ref,       # (1, E)     f32   scale folded in
    bkv_ref,      # (1, 2E)    f32
    wo_ref,       # (E, E)     bf16  Wo^T
    bo_ref,       # (1, E)     f32
    gamma_ref,    # (1, E)     f32   LayerNorm weight
    beta_ref,     # (1, E)     f32   LayerNorm bias
    o_ref,        # (1, Tq, E)
    kt_scratch,   # (E, S)  bf16   K^T (head-blocks on sublanes), persists over q tiles
    v_scratch,    # (S, E)  bf16   V, persists over q tiles
    ctx_scratch,  # (Tq, E) bf16   concatenated per-head contexts
    *,
    num_heads: int,
    q_tile: int,
    kv_chunk: int,
    eps: float = 1e-5,
):
    S = x_ref.shape[1]
    E = x_ref.shape[2]
    hd = E // num_heads
    Tq = q_tile

    # ---- K/V projection: once per batch item, chunked over S ---------------
    # Each chunk does one fused (C, E) @ (E, 2E) MXU pass and writes bf16
    # straight into the persistent scratches; K is stored transposed so the
    # per-head score matmul never needs a transposed operand.
    @pl.when(pl.program_id(1) == 0)
    def _():
        for c0 in range(0, S, kv_chunk):
            x_c = x_ref[0, c0:c0 + kv_chunk, :].astype(jnp.bfloat16)        # (C, E)
            kv = jnp.dot(x_c, wkv_ref[...],
                         preferred_element_type=jnp.float32) + bkv_ref[...]  # (C, 2E) f32
            k_c = kv[:, :E].astype(jnp.bfloat16)                             # (C, E)
            v_c = kv[:, E:].astype(jnp.bfloat16)                             # (C, E)
            kt_scratch[:, c0:c0 + kv_chunk] = k_c.T                          # once-per-batch transpose
            v_scratch[c0:c0 + kv_chunk, :] = v_c

    # ---- Q projection for this query tile (sliced from the resident block) --
    q_start = pl.multiple_of(pl.program_id(1) * Tq, Tq)
    x_q = x_ref[0, pl.ds(q_start, Tq), :]                                    # (Tq, E) f32, reused for residual
    q = jnp.dot(x_q.astype(jnp.bfloat16), wq_ref[...],
                preferred_element_type=jnp.float32) + bq_ref[...]            # (Tq, E) f32

    # ---- per-head attention (static unroll, static slice offsets) ----------
    for h in range(num_heads):
        lo = h * hd
        qh = q[:, lo:lo + hd].astype(jnp.bfloat16)                           # (Tq, hd)
        kh_t = kt_scratch[lo:lo + hd, :]                                     # (hd, S)  sublane slice
        s = jnp.dot(qh, kh_t, preferred_element_type=jnp.float32)            # (Tq, S)

        m = jnp.max(s, axis=-1, keepdims=True)
        p = jnp.exp(s - m)                                                   # f32 softmax numerator
        l = jnp.sum(p, axis=-1, keepdims=True)                               # (Tq, 1)

        vh = v_scratch[:, lo:lo + hd]                                        # (S, hd)
        ctx = jnp.dot(p.astype(jnp.bfloat16), vh,
                      preferred_element_type=jnp.float32)                    # (Tq, hd)
        # deferred normalization on the small (Tq, hd) context
        ctx_scratch[:, lo:lo + hd] = (
            ctx * pl.reciprocal(l, approx=False)).astype(jnp.bfloat16)

    # ---- output projection + residual + LayerNorm (f32) --------------------
    attn_out = jnp.dot(ctx_scratch[...], wo_ref[...],
                       preferred_element_type=jnp.float32) + bo_ref[...]     # (Tq, E)
    resid = x_q + attn_out
    mean = jnp.mean(resid, axis=-1, keepdims=True)
    centered = resid - mean
    var = jnp.mean(centered * centered, axis=-1, keepdims=True)
    y = centered * jax.lax.rsqrt(var + eps) * gamma_ref[...] + beta_ref[...]

    o_ref[0] = y.astype(o_ref.dtype)


def prepare_params(params, num_heads):
    """One-time prep: transpose torch-layout weights, fuse K/V weights, fold the
    1/sqrt(hd) softmax scale into Wq/bq, cast matmul weights to bf16."""
    in_w = params["in_proj_weight"]                       # (3E, E)
    in_b = params["in_proj_bias"]                         # (3E,)
    E = in_w.shape[1]
    assert E % num_heads == 0, "embed_dim must be divisible by num_heads"
    scale = 1.0 / math.sqrt(E // num_heads)

    wq = (in_w[0 * E:1 * E].T * scale).astype(jnp.bfloat16)      # (E, E)
    wkv = in_w[1 * E:3 * E].T.astype(jnp.bfloat16)               # (E, 2E) = [Wk^T|Wv^T]
    bq = (in_b[0 * E:1 * E] * scale).reshape(1, E).astype(jnp.float32)
    bkv = in_b[1 * E:3 * E].reshape(1, 2 * E).astype(jnp.float32)
    wo = params["out_proj_weight"].T.astype(jnp.bfloat16)        # (E, E)
    bo = params["out_proj_bias"].reshape(1, E).astype(jnp.float32)
    gamma = params["ln_weight"].reshape(1, E).astype(jnp.float32)
    beta = params["ln_bias"].reshape(1, E).astype(jnp.float32)
    return dict(wq=wq, wkv=wkv, bq=bq, bkv=bkv, wo=wo, bo=bo,
                gamma=gamma, beta=beta)


def _largest_divisor_leq(n, cap):
    """Largest divisor of n that is <= cap (keeps every tile full-sized)."""
    cap = max(1, min(cap, n))
    for t in range(cap, 0, -1):
        if n % t == 0:
            return t
    return n


def _vmem_limit_bytes(S, E, Tq, C):
    """Derive the scoped-VMEM limit from actual buffer math, clamped to the
    chip's VMEM capacity (review: don't hard-code 32 MiB)."""
    weights = (E * E + E * 2 * E + E * E) * 2 + 6 * E * 4       # bf16 mats (single-buffered) + f32 vecs
    x_in = 2 * S * E * 4                                        # full-seq f32 input, double-buffered
    out = 2 * Tq * E * 4                                        # output tile, double-buffered
    scratch = E * S * 2 + S * E * 2 + Tq * E * 2                # K^T, V, ctx (bf16)
    temps = 6 * Tq * S * 4 + 4 * C * 2 * E * 4                  # (Tq,S) softmax temps + KV chunk temps
    est = weights + x_in + out + scratch + temps
    try:
        info = pltpu.get_tpu_info()
        cap = getattr(info, "vmem_capacity_bytes", 128 * 1024 * 1024)
    except Exception:
        cap = 128 * 1024 * 1024                                 # conservative v5e/v6e default
    limit = max(32 * 1024 * 1024, 2 * est)
    return int(min(limit, int(0.85 * cap)))


def attention_block(x, prepped, num_heads, *, q_tile=256, kv_chunk=512):
    """x: (B, S, E) float32.  prepped: output of prepare_params()."""
    B, S, E = x.shape
    assert E % num_heads == 0, "embed_dim must be divisible by num_heads"
    # For best layout behaviour use E % 128 == 0 and head_dim % 128 == 0; the
    # kernel stays correct otherwise (sub-128 head slices use masked lane ops).
    Tq = _largest_divisor_leq(S, q_tile)      # sweep 256-512 on v6e, 128-256 on v7x
    C = _largest_divisor_leq(S, kv_chunk)     # KV projection chunk rows
    n_q = S // Tq

    def _const_spec(shape):
        # Constant block index -> fetched once; Buffered(1) drops the second
        # pipeline buffer for these never-changing blocks (VMEM savings).
        try:
            return pl.BlockSpec(shape, lambda b, qi: (0, 0),
                                pipeline_mode=pl.Buffered(1))
        except TypeError:  # older jax without pipeline_mode kwarg
            return pl.BlockSpec(shape, lambda b, qi: (0, 0))

    return pl.pallas_call(
        partial(attention_block_kernel, num_heads=num_heads,
                q_tile=Tq, kv_chunk=C),
        out_shape=jax.ShapeDtypeStruct((B, S, E), x.dtype),
        grid_spec=pltpu.PrefetchScalarGridSpec(
            num_scalar_prefetch=0,
            grid=(B, n_q),
            in_specs=[
                # Single activation stream: full sequence per batch item (also
                # provides the query tile + residual rows via in-kernel pl.ds).
                pl.BlockSpec((1, S, E), lambda b, qi: (b, 0, 0)),
                _const_spec((E, E)),          # wq
                _const_spec((E, 2 * E)),      # wkv (fused)
                _const_spec((1, E)),          # bq
                _const_spec((1, 2 * E)),      # bkv
                _const_spec((E, E)),          # wo
                _const_spec((1, E)),          # bo
                _const_spec((1, E)),          # gamma
                _const_spec((1, E)),          # beta
            ],
            out_specs=pl.BlockSpec((1, Tq, E), lambda b, qi: (b, qi, 0)),
            scratch_shapes=[
                pltpu.VMEM((E, S), jnp.bfloat16),    # K^T (persists across q tiles)
                pltpu.VMEM((S, E), jnp.bfloat16),    # V
                pltpu.VMEM((Tq, E), jnp.bfloat16),   # concatenated head contexts
            ],
        ),
        compiler_params=pltpu.CompilerParams(
            # batch axis feeds megacore / 2nd TC; the q-tile axis must stay
            # sequential because K/V scratch is carried across it.
            dimension_semantics=("parallel", "arbitrary"),
            vmem_limit_bytes=_vmem_limit_bytes(S, E, Tq, C),
        ),
    )(x, prepped["wq"], prepped["wkv"], prepped["bq"], prepped["bkv"],
      prepped["wo"], prepped["bo"], prepped["gamma"], prepped["beta"])


def init_params(key, embed_dim):
    """Deterministic synthetic parameters with nn.MultiheadAttention shapes."""
    k1, k2, k3, k4 = jax.random.split(key, 4)
    E = embed_dim
    bound = 1.0 / math.sqrt(E)
    return {
        "in_proj_weight": jax.random.uniform(k1, (3 * E, E), jnp.float32, -bound, bound),
        "in_proj_bias":   jax.random.uniform(k2, (3 * E,),   jnp.float32, -bound, bound),
        "out_proj_weight": jax.random.uniform(k3, (E, E),    jnp.float32, -bound, bound),
        "out_proj_bias":  jax.random.uniform(k4, (E,),       jnp.float32, -bound, bound),
        "ln_weight": jnp.ones((E,), jnp.float32),
        "ln_bias":   jnp.zeros((E,), jnp.float32),
    }


def reference_attention_block(x, params, num_heads):
    """Pure-JAX f32 reference (mirrors torch.nn.MultiheadAttention, eval mode)."""
    B, S, E = x.shape
    hd = E // num_heads
    in_w, in_b = params["in_proj_weight"], params["in_proj_bias"]
    q = x @ in_w[0 * E:1 * E].T + in_b[0 * E:1 * E]
    k = x @ in_w[1 * E:2 * E].T + in_b[1 * E:2 * E]
    v = x @ in_w[2 * E:3 * E].T + in_b[2 * E:3 * E]
    q = q.reshape(B, S, num_heads, hd).transpose(0, 2, 1, 3) / math.sqrt(hd)
    k = k.reshape(B, S, num_heads, hd).transpose(0, 2, 1, 3)
    v = v.reshape(B, S, num_heads, hd).transpose(0, 2, 1, 3)
    scores = jnp.einsum("bhqd,bhkd->bhqk", q, k)
    attn = jax.nn.softmax(scores, axis=-1)
    o = jnp.einsum("bhqk,bhkd->bhqd", attn, v).transpose(0, 2, 1, 3).reshape(B, S, E)
    o = o @ params["out_proj_weight"].T + params["out_proj_bias"]
    resid = x + o
    mean = resid.mean(-1, keepdims=True)
    var = ((resid - mean) ** 2).mean(-1, keepdims=True)
    return (resid - mean) / jnp.sqrt(var + 1e-5) * params["ln_weight"] + params["ln_bias"]


if __name__ == "__main__":
    B, S, E, H = 2, 8, 32, 4

    key = jax.random.PRNGKey(0)
    kx, kp = jax.random.split(key)
    x = jax.random.normal(kx, (B, S, E), jnp.float32)
    params = init_params(kp, E)
    prepped = prepare_params(params, H)       # one-time, off the per-call path

    out = attention_block(x, prepped, num_heads=H)
    out = jax.block_until_ready(out)

    ref = reference_attention_block(x, params, num_heads=H)
    assert out.shape == (B, S, E)
    err = float(jnp.max(jnp.abs(out - ref)))
    # bf16 MXU inputs vs f32 reference -> loosened tolerance
    assert jnp.allclose(out, ref, atol=3e-2, rtol=3e-2), f"max abs err {err}"

    print("KERNEL_OK")
</pallas_src>

<mosaic_0001>
module attributes {stable_mosaic.version = 11 : i64} {
  func.func @attention_block_kernel(%arg0: i32, %arg1: i32, %arg2: memref<1x8x32xf32, #tpu.memory_space<vmem>>, %arg3: memref<32x32xbf16, #tpu.memory_space<vmem>>, %arg4: memref<32x64xbf16, #tpu.memory_space<vmem>>, %arg5: memref<1x32xf32, #tpu.memory_space<vmem>>, %arg6: memref<1x64xf32, #tpu.memory_space<vmem>>, %arg7: memref<32x32xbf16, #tpu.memory_space<vmem>>, %arg8: memref<1x32xf32, #tpu.memory_space<vmem>>, %arg9: memref<1x32xf32, #tpu.memory_space<vmem>>, %arg10: memref<1x32xf32, #tpu.memory_space<vmem>>, %arg11: memref<1x8x32xf32, #tpu.memory_space<vmem>>, %arg12: memref<32x8xbf16, #tpu.memory_space<vmem>>, %arg13: memref<8x32xbf16, #tpu.memory_space<vmem>>, %arg14: memref<8x32xbf16, #tpu.memory_space<vmem>>) attributes {dimension_semantics = [#tpu.dimension_semantics<parallel>, #tpu.dimension_semantics<arbitrary>], iteration_bounds = array<i64: 2, 1>, scalar_prefetch = 0 : i64, scratch_operands = 3 : i64, tpu.core_type = #tpu.core_type<tc>, window_params = [{transform_indices = @transform_0, window_bounds = array<i64: 1, 8, 32>}, {pipeline_mode = #tpu.pipeline_mode<synchronous>, transform_indices = @transform_1, window_bounds = array<i64: 32, 32>}, {pipeline_mode = #tpu.pipeline_mode<synchronous>, transform_indices = @transform_2, window_bounds = array<i64: 32, 64>}, {pipeline_mode = #tpu.pipeline_mode<synchronous>, transform_indices = @transform_3, window_bounds = array<i64: 1, 32>}, {pipeline_mode = #tpu.pipeline_mode<synchronous>, transform_indices = @transform_4, window_bounds = array<i64: 1, 64>}, {pipeline_mode = #tpu.pipeline_mode<synchronous>, transform_indices = @transform_5, window_bounds = array<i64: 32, 32>}, {pipeline_mode = #tpu.pipeline_mode<synchronous>, transform_indices = @transform_6, window_bounds = array<i64: 1, 32>}, {pipeline_mode = #tpu.pipeline_mode<synchronous>, transform_indices = @transform_7, window_bounds = array<i64: 1, 32>}, {pipeline_mode = #tpu.pipeline_mode<synchronous>, transform_indices = @transform_8, window_bounds = array<i64: 1, 32>}, {transform_indices = @transform_9, window_bounds = array<i64: 1, 8, 32>}]} {
    %c0_i32 = arith.constant 0 : i32
    %0 = arith.cmpi eq, %arg1, %c0_i32 : i32
    %1 = arith.extui %0 : i1 to i32
    %c0_i32_0 = arith.constant 0 : i32
    %2 = arith.cmpi ne, %1, %c0_i32_0 : i32
    scf.if %2 {
      %c0_62 = arith.constant 0 : index
      %c0_63 = arith.constant 0 : index
      %c0_64 = arith.constant 0 : index
      %122 = vector.load %arg2[%c0_62, %c0_63, %c0_64] : memref<1x8x32xf32, #tpu.memory_space<vmem>>, vector<1x8x32xf32>
      %123 = vector.shape_cast %122 : vector<1x8x32xf32> to vector<8x32xf32>
      %124 = arith.truncf %123 : vector<8x32xf32> to vector<8x32xbf16>
      %c0_65 = arith.constant 0 : index
      %c0_66 = arith.constant 0 : index
      %125 = vector.load %arg4[%c0_65, %c0_66] : memref<32x64xbf16, #tpu.memory_space<vmem>>, vector<32x64xbf16>
      %cst_67 = arith.constant dense<0.000000e+00> : vector<8x64xf32>
      %126 = tpu.matmul %124, %125, %cst_67 {dimension_numbers = #tpu.dot_dimension_numbers<[1], [0], [0], [1], [0, 0, 1, 1], [], []>} : vector<8x32xbf16>, vector<32x64xbf16>, vector<8x64xf32> -> vector<8x64xf32>
      %c0_68 = arith.constant 0 : index
      %c0_69 = arith.constant 0 : index
      %127 = vector.load %arg6[%c0_68, %c0_69] : memref<1x64xf32, #tpu.memory_space<vmem>>, vector<1x64xf32>
      %128 = vector.broadcast %127 : vector<1x64xf32> to vector<8x64xf32>
      %129 = arith.addf %126, %128 : vector<8x64xf32>
      %130 = vector.extract_strided_slice %129 {offsets = [0, 0], sizes = [8, 32], strides = [1, 1]} : vector<8x64xf32> to vector<8x32xf32>
      %131 = arith.truncf %130 : vector<8x32xf32> to vector<8x32xbf16>
      %132 = vector.extract_strided_slice %129 {offsets = [0, 32], sizes = [8, 32], strides = [1, 1]} : vector<8x64xf32> to vector<8x32xf32>
      %133 = arith.truncf %132 : vector<8x32xf32> to vector<8x32xbf16>
      %134 = tpu.transpose %131, [1, 0] : vector<8x32xbf16> -> vector<32x8xbf16>
      %c0_70 = arith.constant 0 : index
      %c0_71 = arith.constant 0 : index
      %135 = vector.load %arg12[%c0_70, %c0_71] : memref<32x8xbf16, #tpu.memory_space<vmem>>, vector<32x8xbf16>
      tpu.vector_store %arg12[%c0_70, %c0_71], %134 {strides = array<i32>} : memref<32x8xbf16, #tpu.memory_space<vmem>>, vector<32x8xbf16>,
      %c0_72 = arith.constant 0 : index
      %c0_73 = arith.constant 0 : index
      %136 = vector.load %arg13[%c0_72, %c0_73] : memref<8x32xbf16, #tpu.memory_space<vmem>>, vector<8x32xbf16>
      tpu.vector_store %arg13[%c0_72, %c0_73], %133 {strides = array<i32>} : memref<8x32xbf16, #tpu.memory_space<vmem>>, vector<8x32xbf16>,
    } else {
    }
    %c8_i32 = arith.constant 8 : i32
    %3 = arith.muli %arg1, %c8_i32 : i32
    %4 = tpu.assume_multiple %3, 8 : i32
    %c0 = arith.constant 0 : index
    %5 = arith.index_cast %4 : i32 to index
    %c0_1 = arith.constant 0 : index
    %6 = vector.load %arg2[%c0, %5, %c0_1] : memref<1x8x32xf32, #tpu.memory_space<vmem>>, vector<1x8x32xf32>
    %7 = vector.shape_cast %6 : vector<1x8x32xf32> to vector<8x32xf32>
    %8 = arith.truncf %7 : vector<8x32xf32> to vector<8x32xbf16>
    %c0_2 = arith.constant 0 : index
    %c0_3 = arith.constant 0 : index
    %9 = vector.load %arg3[%c0_2, %c0_3] : memref<32x32xbf16, #tpu.memory_space<vmem>>, vector<32x32xbf16>
    %cst = arith.constant dense<0.000000e+00> : vector<8x32xf32>
    %10 = tpu.matmul %8, %9, %cst {dimension_numbers = #tpu.dot_dimension_numbers<[1], [0], [0], [1], [0, 0, 1, 1], [], []>} : vector<8x32xbf16>, vector<32x32xbf16>, vector<8x32xf32> -> vector<8x32xf32>
    %c0_4 = arith.constant 0 : index
    %c0_5 = arith.constant 0 : index
    %11 = vector.load %arg5[%c0_4, %c0_5] : memref<1x32xf32, #tpu.memory_space<vmem>>, vector<1x32xf32>
    %12 = vector.broadcast %11 : vector<1x32xf32> to vector<8x32xf32>
    %13 = arith.addf %10, %12 : vector<8x32xf32>
    %14 = vector.extract_strided_slice %13 {offsets = [0, 0], sizes = [8, 8], strides = [1, 1]} : vector<8x32xf32> to vector<8x8xf32>
    %15 = arith.truncf %14 : vector<8x8xf32> to vector<8x8xbf16>
    %c0_6 = arith.constant 0 : index
    %c0_7 = arith.constant 0 : index
    %16 = vector.load %arg12[%c0_6, %c0_7] : memref<32x8xbf16, #tpu.memory_space<vmem>>, vector<8x8xbf16>
    %cst_8 = arith.constant dense<0.000000e+00> : vector<8x8xf32>
    %17 = tpu.matmul %15, %16, %cst_8 {dimension_numbers = #tpu.dot_dimension_numbers<[1], [0], [0], [1], [0, 0, 1, 1], [], []>} : vector<8x8xbf16>, vector<8x8xbf16>, vector<8x8xf32> -> vector<8x8xf32>
    %cst_9 = arith.constant dense<0xFF800000> : vector<8xf32>
    %18 = vector.multi_reduction <maximumf>, %17, %cst_9 [1] : vector<8x8xf32> to vector<8xf32>
    %19 = vector.shape_cast %18 : vector<8xf32> to vector<8x1xf32>
    %20 = vector.broadcast %19 : vector<8x1xf32> to vector<8x8xf32>
    %21 = arith.subf %17, %20 : vector<8x8xf32>
    %22 = math.exp %21 : vector<8x8xf32>
    %cst_10 = arith.constant dense<0.000000e+00> : vector<8xf32>
    %23 = vector.multi_reduction <add>, %22, %cst_10 [1] : vector<8x8xf32> to vector<8xf32>
    %24 = vector.shape_cast %23 : vector<8xf32> to vector<8x1xf32>
    %c0_11 = arith.constant 0 : index
    %c0_12 = arith.constant 0 : index
    %25 = vector.load %arg13[%c0_11, %c0_12] : memref<8x32xbf16, #tpu.memory_space<vmem>>, vector<8x8xbf16>
    %26 = arith.truncf %22 : vector<8x8xf32> to vector<8x8xbf16>
    %cst_13 = arith.constant dense<0.000000e+00> : vector<8x8xf32>
    %27 = tpu.matmul %26, %25, %cst_13 {dimension_numbers = #tpu.dot_dimension_numbers<[1], [0], [0], [1], [0, 0, 1, 1], [], []>} : vector<8x8xbf16>, vector<8x8xbf16>, vector<8x8xf32> -> vector<8x8xf32>
    %28 = tpu.reciprocal %24 : vector<8x1xf32> -> vector<8x1xf32>
    %29 = vector.broadcast %28 : vector<8x1xf32> to vector<8x8xf32>
    %30 = arith.mulf %27, %29 : vector<8x8xf32>
    %31 = arith.truncf %30 : vector<8x8xf32> to vector<8x8xbf16>
    %c0_14 = arith.constant 0 : index
    %c0_15 = arith.constant 0 : index
    %32 = vector.load %arg14[%c0_14, %c0_15] : memref<8x32xbf16, #tpu.memory_space<vmem>>, vector<8x8xbf16>
    tpu.vector_store %arg14[%c0_14, %c0_15], %31 {strides = array<i32>} : memref<8x32xbf16, #tpu.memory_space<vmem>>, vector<8x8xbf16>,
    %33 = vector.extract_strided_slice %13 {offsets = [0, 8], sizes = [8, 8], strides = [1, 1]} : vector<8x32xf32> to vector<8x8xf32>
    %34 = arith.truncf %33 : vector<8x8xf32> to vector<8x8xbf16>
    %c8 = arith.constant 8 : index
    %c0_16 = arith.constant 0 : index
    %35 = vector.load %arg12[%c8, %c0_16] : memref<32x8xbf16, #tpu.memory_space<vmem>>, vector<8x8xbf16>
    %cst_17 = arith.constant dense<0.000000e+00> : vector<8x8xf32>
    %36 = tpu.matmul %34, %35, %cst_17 {dimension_numbers = #tpu.dot_dimension_numbers<[1], [0], [0], [1], [0, 0, 1, 1], [], []>} : vector<8x8xbf16>, vector<8x8xbf16>, vector<8x8xf32> -> vector<8x8xf32>
    %cst_18 = arith.constant dense<0xFF800000> : vector<8xf32>
    %37 = vector.multi_reduction <maximumf>, %36, %cst_18 [1] : vector<8x8xf32> to vector<8xf32>
    %38 = vector.shape_cast %37 : vector<8xf32> to vector<8x1xf32>
    %39 = vector.broadcast %38 : vector<8x1xf32> to vector<8x8xf32>
    %40 = arith.subf %36, %39 : vector<8x8xf32>
    %41 = math.exp %40 : vector<8x8xf32>
    %cst_19 = arith.constant dense<0.000000e+00> : vector<8xf32>
    %42 = vector.multi_reduction <add>, %41, %cst_19 [1] : vector<8x8xf32> to vector<8xf32>
    %43 = vector.shape_cast %42 : vector<8xf32> to vector<8x1xf32>
    %c0_20 = arith.constant 0 : index
    %c8_21 = arith.constant 8 : index
    %44 = vector.load %arg13[%c0_20, %c8_21] : memref<8x32xbf16, #tpu.memory_space<vmem>>, vector<8x8xbf16>
    %45 = arith.truncf %41 : vector<8x8xf32> to vector<8x8xbf16>
    %cst_22 = arith.constant dense<0.000000e+00> : vector<8x8xf32>
    %46 = tpu.matmul %45, %44, %cst_22 {dimension_numbers = #tpu.dot_dimension_numbers<[1], [0], [0], [1], [0, 0, 1, 1], [], []>} : vector<8x8xbf16>, vector<8x8xbf16>, vector<8x8xf32> -> vector<8x8xf32>
    %47 = tpu.reciprocal %43 : vector<8x1xf32> -> vector<8x1xf32>
    %48 = vector.broadcast %47 : vector<8x1xf32> to vector<8x8xf32>
    %49 = arith.mulf %46, %48 : vector<8x8xf32>
    %50 = arith.truncf %49 : vector<8x8xf32> to vector<8x8xbf16>
    %c0_23 = arith.constant 0 : index
    %c8_24 = arith.constant 8 : index
    %51 = vector.load %arg14[%c0_23, %c8_24] : memref<8x32xbf16, #tpu.memory_space<vmem>>, vector<8x8xbf16>
    tpu.vector_store %arg14[%c0_23, %c8_24], %50 {strides = array<i32>} : memref<8x32xbf16, #tpu.memory_space<vmem>>, vector<8x8xbf16>,
    %52 = vector.extract_strided_slice %13 {offsets = [0, 16], sizes = [8, 8], strides = [1, 1]} : vector<8x32xf32> to vector<8x8xf32>
    %53 = arith.truncf %52 : vector<8x8xf32> to vector<8x8xbf16>
    %c16 = arith.constant 16 : index
    %c0_25 = arith.constant 0 : index
    %54 = vector.load %arg12[%c16, %c0_25] : memref<32x8xbf16, #tpu.memory_space<vmem>>, vector<8x8xbf16>
    %cst_26 = arith.constant dense<0.000000e+00> : vector<8x8xf32>
    %55 = tpu.matmul %53, %54, %cst_26 {dimension_numbers = #tpu.dot_dimension_numbers<[1], [0], [0], [1], [0, 0, 1, 1], [], []>} : vector<8x8xbf16>, vector<8x8xbf16>, vector<8x8xf32> -> vector<8x8xf32>
    %cst_27 = arith.constant dense<0xFF800000> : vector<8xf32>
    %56 = vector.multi_reduction <maximumf>, %55, %cst_27 [1] : vector<8x8xf32> to vector<8xf32>
    %57 = vector.shape_cast %56 : vector<8xf32> to vector<8x1xf32>
    %58 = vector.broadcast %57 : vector<8x1xf32> to vector<8x8xf32>
    %59 = arith.subf %55, %58 : vector<8x8xf32>
    %60 = math.exp %59 : vector<8x8xf32>
    %cst_28 = arith.constant dense<0.000000e+00> : vector<8xf32>
    %61 = vector.multi_reduction <add>, %60, %cst_28 [1] : vector<8x8xf32> to vector<8xf32>
    %62 = vector.shape_cast %61 : vector<8xf32> to vector<8x1xf32>
    %c0_29 = arith.constant 0 : index
    %c16_30 = arith.constant 16 : index
    %63 = vector.load %arg13[%c0_29, %c16_30] : memref<8x32xbf16, #tpu.memory_space<vmem>>, vector<8x8xbf16>
    %64 = arith.truncf %60 : vector<8x8xf32> to vector<8x8xbf16>
    %cst_31 = arith.constant dense<0.000000e+00> : vector<8x8xf32>
    %65 = tpu.matmul %64, %63, %cst_31 {dimension_numbers = #tpu.dot_dimension_numbers<[1], [0], [0], [1], [0, 0, 1, 1], [], []>} : vector<8x8xbf16>, vector<8x8xbf16>, vector<8x8xf32> -> vector<8x8xf32>
    %66 = tpu.reciprocal %62 : vector<8x1xf32> -> vector<8x1xf32>
    %67 = vector.broadcast %66 : vector<8x1xf32> to vector<8x8xf32>
    %68 = arith.mulf %65, %67 : vector<8x8xf32>
    %69 = arith.truncf %68 : vector<8x8xf32> to vector<8x8xbf16>
    %c0_32 = arith.constant 0 : index
    %c16_33 = arith.constant 16 : index
    %70 = vector.load %arg14[%c0_32, %c16_33] : memref<8x32xbf16, #tpu.memory_space<vmem>>, vector<8x8xbf16>
    tpu.vector_store %arg14[%c0_32, %c16_33], %69 {strides = array<i32>} : memref<8x32xbf16, #tpu.memory_space<vmem>>, vector<8x8xbf16>,
    %71 = vector.extract_strided_slice %13 {offsets = [0, 24], sizes = [8, 8], strides = [1, 1]} : vector<8x32xf32> to vector<8x8xf32>
    %72 = arith.truncf %71 : vector<8x8xf32> to vector<8x8xbf16>
    %c24 = arith.constant 24 : index
    %c0_34 = arith.constant 0 : index
    %73 = vector.load %arg12[%c24, %c0_34] : memref<32x8xbf16, #tpu.memory_space<vmem>>, vector<8x8xbf16>
    %cst_35 = arith.constant dense<0.000000e+00> : vector<8x8xf32>
    %74 = tpu.matmul %72, %73, %cst_35 {dimension_numbers = #tpu.dot_dimension_numbers<[1], [0], [0], [1], [0, 0, 1, 1], [], []>} : vector<8x8xbf16>, vector<8x8xbf16>, vector<8x8xf32> -> vector<8x8xf32>
    %cst_36 = arith.constant dense<0xFF800000> : vector<8xf32>
    %75 = vector.multi_reduction <maximumf>, %74, %cst_36 [1] : vector<8x8xf32> to vector<8xf32>
    %76 = vector.shape_cast %75 : vector<8xf32> to vector<8x1xf32>
    %77 = vector.broadcast %76 : vector<8x1xf32> to vector<8x8xf32>
    %78 = arith.subf %74, %77 : vector<8x8xf32>
    %79 = math.exp %78 : vector<8x8xf32>
    %cst_37 = arith.constant dense<0.000000e+00> : vector<8xf32>
    %80 = vector.multi_reduction <add>, %79, %cst_37 [1] : vector<8x8xf32> to vector<8xf32>
    %81 = vector.shape_cast %80 : vector<8xf32> to vector<8x1xf32>
    %c0_38 = arith.constant 0 : index
    %c24_39 = arith.constant 24 : index
    %82 = vector.load %arg13[%c0_38, %c24_39] : memref<8x32xbf16, #tpu.memory_space<vmem>>, vector<8x8xbf16>
    %83 = arith.truncf %79 : vector<8x8xf32> to vector<8x8xbf16>
    %cst_40 = arith.constant dense<0.000000e+00> : vector<8x8xf32>
    %84 = tpu.matmul %83, %82, %cst_40 {dimension_numbers = #tpu.dot_dimension_numbers<[1], [0], [0], [1], [0, 0, 1, 1], [], []>} : vector<8x8xbf16>, vector<8x8xbf16>, vector<8x8xf32> -> vector<8x8xf32>
    %85 = tpu.reciprocal %81 : vector<8x1xf32> -> vector<8x1xf32>
    %86 = vector.broadcast %85 : vector<8x1xf32> to vector<8x8xf32>
    %87 = arith.mulf %84, %86 : vector<8x8xf32>
    %88 = arith.truncf %87 : vector<8x8xf32> to vector<8x8xbf16>
    %c0_41 = arith.constant 0 : index
    %c24_42 = arith.constant 24 : index
    %89 = vector.load %arg14[%c0_41, %c24_42] : memref<8x32xbf16, #tpu.memory_space<vmem>>, vector<8x8xbf16>
    tpu.vector_store %arg14[%c0_41, %c24_42], %88 {strides = array<i32>} : memref<8x32xbf16, #tpu.memory_space<vmem>>, vector<8x8xbf16>,
    %c0_43 = arith.constant 0 : index
    %c0_44 = arith.constant 0 : index
    %90 = vector.load %arg14[%c0_43, %c0_44] : memref<8x32xbf16, #tpu.memory_space<vmem>>, vector<8x32xbf16>
    %c0_45 = arith.constant 0 : index
    %c0_46 = arith.constant 0 : index
    %91 = vector.load %arg7[%c0_45, %c0_46] : memref<32x32xbf16, #tpu.memory_space<vmem>>, vector<32x32xbf16>
    %cst_47 = arith.constant dense<0.000000e+00> : vector<8x32xf32>
    %92 = tpu.matmul %90, %91, %cst_47 {dimension_numbers = #tpu.dot_dimension_numbers<[1], [0], [0], [1], [0, 0, 1, 1], [], []>} : vector<8x32xbf16>, vector<32x32xbf16>, vector<8x32xf32> -> vector<8x32xf32>
    %c0_48 = arith.constant 0 : index
    %c0_49 = arith.constant 0 : index
    %93 = vector.load %arg8[%c0_48, %c0_49] : memref<1x32xf32, #tpu.memory_space<vmem>>, vector<1x32xf32>
    %94 = vector.broadcast %93 : vector<1x32xf32> to vector<8x32xf32>
    %95 = arith.addf %92, %94 : vector<8x32xf32>
    %96 = arith.addf %7, %95 : vector<8x32xf32>
    %cst_50 = arith.constant dense<0.000000e+00> : vector<8xf32>
    %97 = vector.multi_reduction <add>, %96, %cst_50 [1] : vector<8x32xf32> to vector<8xf32>
    %98 = vector.shape_cast %97 : vector<8xf32> to vector<8x1xf32>
    %cst_51 = arith.constant 3.200000e+01 : f32
    %99 = vector.broadcast %cst_51 : f32 to vector<8x1xf32>
    %100 = arith.divf %98, %99 : vector<8x1xf32>
    %101 = vector.broadcast %100 : vector<8x1xf32> to vector<8x32xf32>
    %102 = arith.subf %96, %101 : vector<8x32xf32>
    %103 = arith.mulf %102, %102 : vector<8x32xf32>
    %cst_52 = arith.constant dense<0.000000e+00> : vector<8xf32>
    %104 = vector.multi_reduction <add>, %103, %cst_52 [1] : vector<8x32xf32> to vector<8xf32>
    %105 = vector.shape_cast %104 : vector<8xf32> to vector<8x1xf32>
    %cst_53 = arith.constant 3.200000e+01 : f32
    %106 = vector.broadcast %cst_53 : f32 to vector<8x1xf32>
    %107 = arith.divf %105, %106 : vector<8x1xf32>
    %cst_54 = arith.constant 9.99999974E-6 : f32
    %108 = vector.broadcast %cst_54 : f32 to vector<8x1xf32>
    %109 = arith.addf %107, %108 : vector<8x1xf32>
    %110 = math.rsqrt %109 : vector<8x1xf32>
    %111 = vector.broadcast %110 : vector<8x1xf32> to vector<8x32xf32>
    %112 = arith.mulf %102, %111 : vector<8x32xf32>
    %c0_55 = arith.constant 0 : index
    %c0_56 = arith.constant 0 : index
    %113 = vector.load %arg9[%c0_55, %c0_56] : memref<1x32xf32, #tpu.memory_space<vmem>>, vector<1x32xf32>
    %114 = vector.broadcast %113 : vector<1x32xf32> to vector<8x32xf32>
    %115 = arith.mulf %112, %114 : vector<8x32xf32>
    %c0_57 = arith.constant 0 : index
    %c0_58 = arith.constant 0 : index
    %116 = vector.load %arg10[%c0_57, %c0_58] : memref<1x32xf32, #tpu.memory_space<vmem>>, vector<1x32xf32>
    %117 = vector.broadcast %116 : vector<1x32xf32> to vector<8x32xf32>
    %118 = arith.addf %115, %117 : vector<8x32xf32>
    %c0_59 = arith.constant 0 : index
    %c0_60 = arith.constant 0 : index
    %c0_61 = arith.constant 0 : index
    %119 = vector.load %arg11[%c0_59, %c0_60, %c0_61] : memref<1x8x32xf32, #tpu.memory_space<vmem>>, vector<1x8x32xf32>
    %120 = vector.shape_cast %119 : vector<1x8x32xf32> to vector<8x32xf32>
    %121 = vector.shape_cast %118 : vector<8x32xf32> to vector<1x8x32xf32>
    tpu.vector_store %arg11[%c0_59, %c0_60, %c0_61], %121 {strides = array<i32>} : memref<1x8x32xf32, #tpu.memory_space<vmem>>, vector<1x8x32xf32>,
    return
  }
  func.func @transform_0(%arg0: i32, %arg1: i32) -> (i32, i32, i32) {
    %c0_i32 = arith.constant 0 : i32
    %c0_i32_0 = arith.constant 0 : i32
    %c0_i32_1 = arith.constant 0 : i32
    return %arg0, %c0_i32, %c0_i32_0 : i32, i32, i32
  }
  func.func @transform_1(%arg0: i32, %arg1: i32) -> (i32, i32) {
    %c0_i32 = arith.constant 0 : i32
    %c0_i32_0 = arith.constant 0 : i32
    %c0_i32_1 = arith.constant 0 : i32
    return %c0_i32, %c0_i32_0 : i32, i32
  }
  func.func @transform_2(%arg0: i32, %arg1: i32) -> (i32, i32) {
    %c0_i32 = arith.constant 0 : i32
    %c0_i32_0 = arith.constant 0 : i32
    %c0_i32_1 = arith.constant 0 : i32
    return %c0_i32, %c0_i32_0 : i32, i32
  }
  func.func @transform_3(%arg0: i32, %arg1: i32) -> (i32, i32) {
    %c0_i32 = arith.constant 0 : i32
    %c0_i32_0 = arith.constant 0 : i32
    %c0_i32_1 = arith.constant 0 : i32
    return %c0_i32, %c0_i32_0 : i32, i32
  }
  func.func @transform_4(%arg0: i32, %arg1: i32) -> (i32, i32) {
    %c0_i32 = arith.constant 0 : i32
    %c0_i32_0 = arith.constant 0 : i32
    %c0_i32_1 = arith.constant 0 : i32
    return %c0_i32, %c0_i32_0 : i32, i32
  }
  func.func @transform_5(%arg0: i32, %arg1: i32) -> (i32, i32) {
    %c0_i32 = arith.constant 0 : i32
    %c0_i32_0 = arith.constant 0 : i32
    %c0_i32_1 = arith.constant 0 : i32
    return %c0_i32, %c0_i32_0 : i32, i32
  }
  func.func @transform_6(%arg0: i32, %arg1: i32) -> (i32, i32) {
    %c0_i32 = arith.constant 0 : i32
    %c0_i32_0 = arith.constant 0 : i32
    %c0_i32_1 = arith.constant 0 : i32
    return %c0_i32, %c0_i32_0 : i32, i32
  }
  func.func @transform_7(%arg0: i32, %arg1: i32) -> (i32, i32) {
    %c0_i32 = arith.constant 0 : i32
    %c0_i32_0 = arith.constant 0 : i32
    %c0_i32_1 = arith.constant 0 : i32
    return %c0_i32, %c0_i32_0 : i32, i32
  }
  func.func @transform_8(%arg0: i32, %arg1: i32) -> (i32, i32) {
    %c0_i32 = arith.constant 0 : i32
    %c0_i32_0 = arith.constant 0 : i32
    %c0_i32_1 = arith.constant 0 : i32
    return %c0_i32, %c0_i32_0 : i32, i32
  }
  func.func @transform_9(%arg0: i32, %arg1: i32) -> (i32, i32, i32) {
    %c0_i32 = arith.constant 0 : i32
    %c0_i32_0 = arith.constant 0 : i32
    return %arg0, %arg1, %c0_i32 : i32, i32, i32
  }
}

</mosaic_0001>

<llo_original>
// kernel: tpu_custom_call.1
$region0: #{tpu_custom_call.1}
  #allocation0 [shape = 'u32[]', space=smem, size = 0x4, offset = 0x4, fixed_abs, tag = 'smem constant byte address 0x4 - core index']
  #allocation1 [shape = 'u32[72,128]{1,0:T(1,128)}', space=vmem, size = 0x9000, scoped, tag = 'internal scratch']
  #allocation2 [shape = 'bf16[32,8]{1,0:T(8,128)(2,1)}', space=vmem, size = 0x2000, scoped, tag = 'scratch operand']
  #allocation3 [shape = 'bf16[8,32]{1,0:T(8,128)(2,1)}', space=vmem, size = 0x800, scoped, tag = 'scratch operand']
  #allocation4 [shape = 'bf16[8,32]{1,0:T(8,128)(2,1)}', space=vmem, size = 0x800, scoped, tag = 'scratch operand']
  %s0 = inlined_call_operand.hbm [shape: f32[2,8,32], index: 0, kind: input, shape index: {}]
  %s1 = inlined_call_operand.hbm [shape: bf16[32,32], index: 1, kind: input, shape index: {}]
  %s2 = inlined_call_operand.hbm [shape: bf16[32,64], index: 2, kind: input, shape index: {}]
  %s3 = inlined_call_operand.vmem [shape: f32[1,32], index: 3, kind: input, shape index: {}]
  %s4 = inlined_call_operand.vmem [shape: f32[1,64], index: 4, kind: input, shape index: {}]
  %s5 = inlined_call_operand.hbm [shape: bf16[32,32], index: 5, kind: input, shape index: {}]
  %s6 = inlined_call_operand.vmem [shape: f32[1,32], index: 6, kind: input, shape index: {}]
  %s7 = inlined_call_operand.vmem [shape: f32[1,32], index: 7, kind: input, shape index: {}]
  %s8 = inlined_call_operand.vmem [shape: f32[1,32], index: 8, kind: input, shape index: {}]
  %s9 = inlined_call_operand.hbm [shape: f32[2,8,32], index: 9, kind: output, shape index: {}]
  %s10 = sld [smem:[#allocation0]]
  $region89: #{tpu_custom_call.1} parent=0
    _
  %s12 = ssub.s32 1, %s10
  %s13 = scalar_select 0, %s12, %s10
  $region1: #{tpu_custom_call.1} parent=0
    #allocation5 [shape = 'u8[8192]{0}', space=vmem, size = 0x2000, scoped, tag = 'input window, operand 0']
    #allocation6 [shape = 's32[2]{0}', space=sflag, size = 0x8, scoped, tag = 'scoped memory for tpu_custom_call.1']
    #allocation7 [shape = 's32[2]{0}', space=sflag, size = 0x8, scoped, tag = 'scoped memory for tpu_custom_call.1']
    #allocation8 [shape = 'u8[8192]{0}', space=vmem, size = 0x2000, scoped, tag = 'input window, operand 1, single buffered']
    #allocation9 [shape = 's32[1]{0}', space=sflag, size = 0x4, scoped, tag = 'scoped memory for tpu_custom_call.1']
    #allocation10 [shape = 'u8[8192]{0}', space=vmem, size = 0x2000, scoped, tag = 'input window, operand 2, single buffered']
    #allocation11 [shape = 'u8[8192]{0}', space=vmem, size = 0x2000, scoped, tag = 'input window, operand 5, single buffered']
    #allocation12 [shape = 's32[1]{0}', space=sflag, size = 0x4, scoped, tag = 'scoped memory for tpu_custom_call.1']
    #allocation13 [shape = 'u8[8192]{0}', space=vmem, size = 0x2000, scoped, tag = 'output window, operand 0']
    %14 = vsyncpa [#allocation6], 0
    %s15 = scalar_lea.sflag [#allocation6], 1
    %16 = vsyncpa %s15, 0
    %17 = vsyncpa [#allocation9], 0
    %18 = vsyncpa [#allocation12], 0
    %19 = vsyncpa [#allocation7], 0
    %s20 = scalar_lea.sflag [#allocation7], 1
    %21 = vsyncpa %s20, 0
    loop: start=0, step=1, limit=4
    $region2: #{tpu_custom_call.1} parent=1 // loop_pre_header
      _
    $region3: #{tpu_custom_call.1} parent=1 // loop_header
      %s23 = sphi 0, %s27
      %p24 = scmp.ge.s32.totalorder %s23, 4
      %s30 = sphi 0, %s42
      %s31 = sphi 0, %s38
      %s32 = sphi 0, %s30
      %s33 = sphi 0, %s31
      %s34 = sphi 0, %s32
      %s35 = sphi 0, %s33
      %s45 = sphi 0, %s47
      %s48 = sphi 0, %s45
      %s49 = sphi 0, %s48
      %s65 = sphi 0, %s49
      %s69 = sphi 0, %s69
      %s71 = sphi 0, %s69
      %s72 = sphi 0, %s71
      %s86 = sphi 0, %s72
      %s90 = sphi 0, %s90
      %s92 = sphi 0, %s90
      %s93 = sphi 0, %s92
      %s107 = sphi 0, %s93
      %s111 = sphi 0, %s111
      %s113 = sphi 0, %s111
      %s114 = sphi 0, %s113
      %s128 = sphi 0, %s114
      %s132 = sphi 0, %s132
      %s134 = sphi 0, %s132
      %s135 = sphi 0, %s134
      %s149 = sphi 0, %s135
      %s153 = sphi 0, %s153
      %s155 = sphi 0, %s153
      %s156 = sphi 0, %s155
      %s170 = sphi 0, %s156
      %s174 = sphi 0, %s174
      %s176 = sphi 0, %s174
      %s177 = sphi 0, %s176
      %s191 = sphi 0, %s177
      %s195 = sphi 0, %s195
      %s197 = sphi 0, %s195
      %s198 = sphi 0, %s197
      %s212 = sphi 0, %s198
      %s216 = sphi 0, %s216
      %s218 = sphi 0, %s216
      %s219 = sphi 0, %s218
      %s233 = sphi 0, %s219
      %s241 = sphi 0, %s243
      %s244 = sphi 0, %s241
      %s245 = sphi 0, %s244
      %s261 = sphi 0, %s245
    $region4: #{tpu_custom_call.1} parent=1 // loop_header_branch
      %26 = sbr.rel (%p24) target = $region8
    $region5: #{tpu_custom_call.1} parent=1 // loop_body
      %s28 = ssub.s32 %s23, 1
      %s29 = ssub.s32 %s23, 2
      %s36 = sadd.s32 1, %s31
      %p37 = scmp.ge.s32.totalorder %s36, 1
      %s38 = scalar_select %p37, 0, %s36
      %s39 = sadd.s32 1, %s30
      %s40 = scalar_select %p37, %s39, %s30
      %p41 = scmp.ge.s32.totalorder %s40, 2
      %s42 = scalar_select %p41, 0, %s40
      %s43 = ssub.s32 %s30, %s42
      %p44 = scmp.eq.s32.totalorder %s43, 0
      %s46 = sadd.s32 %s45, 1
      %s47 = scalar_select %p44, %s45, %s46
      %p50 = pneg %p44
      %p51 = scmp.eq.s32.totalorder %s23, 1
      %p52 = por %p50, %p51
      %p53 = scmp.ne.s32.totalorder %s45, %s48
      %p54 = scmp.eq.s32.totalorder %s23, 0
      %p55 = por %p53, %p54
      %p56 = scmp.ne.s32.totalorder %s45, %s48
      %p57 = scmp.eq.s32.totalorder %s28, 1
      %p58 = por %p56, %p57
      %p59 = scmp.ne.s32.totalorder %s48, %s49
      %p60 = scmp.eq.s32.totalorder %s28, 0
      %p61 = por %p59, %p60
      %p62 = scmp.ne.s32.totalorder %s48, %s49
      %p63 = scmp.eq.s32.totalorder %s29, 1
      %p64 = por %p62, %p63
      %p66 = scmp.ne.s32.totalorder %s49, %s65
      %p67 = scmp.eq.s32.totalorder %s29, 0
      %p68 = por %p66, %p67
      %s70 = sadd.s32 %s69, 1
      %p73 = scmp.eq.s32.totalorder %s23, 1
      %p74 = scmp.ne.s32.totalorder %s69, %s71
      %p75 = scmp.eq.s32.totalorder %s23, 0
      %p76 = por %p74, %p75
      %p77 = scmp.ne.s32.totalorder %s69, %s71
      %p78 = scmp.eq.s32.totalorder %s28, 1
      %p79 = por %p77, %p78
      %p80 = scmp.ne.s32.totalorder %s71, %s72
      %p81 = scmp.eq.s32.totalorder %s28, 0
      %p82 = por %p80, %p81
      %p83 = scmp.ne.s32.totalorder %s71, %s72
      %p84 = scmp.eq.s32.totalorder %s29, 1
      %p85 = por %p83, %p84
      %p87 = scmp.ne.s32.totalorder %s72, %s86
      %p88 = scmp.eq.s32.totalorder %s29, 0
      %p89 = por %p87, %p88
      %s91 = sadd.s32 %s90, 1
      %p94 = scmp.eq.s32.totalorder %s23, 1
      %p95 = scmp.ne.s32.totalorder %s90, %s92
      %p96 = scmp.eq.s32.totalorder %s23, 0
      %p97 = por %p95, %p96
      %p98 = scmp.ne.s32.totalorder %s90, %s92
      %p99 = scmp.eq.s32.totalorder %s28, 1
      %p100 = por %p98, %p99
      %p101 = scmp.ne.s32.totalorder %s92, %s93
      %p102 = scmp.eq.s32.totalorder %s28, 0
      %p103 = por %p101, %p102
      %p104 = scmp.ne.s32.totalorder %s92, %s93
      %p105 = scmp.eq.s32.totalorder %s29, 1
      %p106 = por %p104, %p105
      %p108 = scmp.ne.s32.totalorder %s93, %s107
      %p109 = scmp.eq.s32.totalorder %s29, 0
      %p110 = por %p108, %p109
      %s112 = sadd.s32 %s111, 1
      %p115 = scmp.eq.s32.totalorder %s23, 1
      %p116 = scmp.ne.s32.totalorder %s111, %s113
      %p117 = scmp.eq.s32.totalorder %s23, 0
      %p118 = por %p116, %p117
      %p119 = scmp.ne.s32.totalorder %s111, %s113
      %p120 = scmp.eq.s32.totalorder %s28, 1
      %p121 = por %p119, %p120
      %p122 = scmp.ne.s32.totalorder %s113, %s114
      %p123 = scmp.eq.s32.totalorder %s28, 0
      %p124 = por %p122, %p123
      %p125 = scmp.ne.s32.totalorder %s113, %s114
      %p126 = scmp.eq.s32.totalorder %s29, 1
      %p127 = por %p125, %p126
      %p129 = scmp.ne.s32.totalorder %s114, %s128
      %p130 = scmp.eq.s32.totalorder %s29, 0
      %p131 = por %p129, %p130
      %s133 = sadd.s32 %s132, 1
      %p136 = scmp.eq.s32.totalorder %s23, 1
      %p137 = scmp.ne.s32.totalorder %s132, %s134
      %p138 = scmp.eq.s32.totalorder %s23, 0
      %p139 = por %p137, %p138
      %p140 = scmp.ne.s32.totalorder %s132, %s134
      %p141 = scmp.eq.s32.totalorder %s28, 1
      %p142 = por %p140, %p141
      %p143 = scmp.ne.s32.totalorder %s134, %s135
      %p144 = scmp.eq.s32.totalorder %s28, 0
      %p145 = por %p143, %p144
      %p146 = scmp.ne.s32.totalorder %s134, %s135
      %p147 = scmp.eq.s32.totalorder %s29, 1
      %p148 = por %p146, %p147
      %p150 = scmp.ne.s32.totalorder %s135, %s149
      %p151 = scmp.eq.s32.totalorder %s29, 0
      %p152 = por %p150, %p151
      %s154 = sadd.s32 %s153, 1
      %p157 = scmp.eq.s32.totalorder %s23, 1
      %p158 = scmp.ne.s32.totalorder %s153, %s155
      %p159 = scmp.eq.s32.totalorder %s23, 0
      %p160 = por %p158, %p159
      %p161 = scmp.ne.s32.totalorder %s153, %s155
      %p162 = scmp.eq.s32.totalorder %s28, 1
      %p163 = por %p161, %p162
      %p164 = scmp.ne.s32.totalorder %s155, %s156
      %p165 = scmp.eq.s32.totalorder %s28, 0
      %p166 = por %p164, %p165
      %p167 = scmp.ne.s32.totalorder %s155, %s156
      %p168 = scmp.eq.s32.totalorder %s29, 1
      %p169 = por %p167, %p168
      %p171 = scmp.ne.s32.totalorder %s156, %s170
      %p172 = scmp.eq.s32.totalorder %s29, 0
      %p173 = por %p171, %p172
      %s175 = sadd.s32 %s174, 1
      %p178 = scmp.eq.s32.totalorder %s23, 1
      %p179 = scmp.ne.s32.totalorder %s174, %s176
      %p180 = scmp.eq.s32.totalorder %s23, 0
      %p181 = por %p179, %p180
      %p182 = scmp.ne.s32.totalorder %s174, %s176
      %p183 = scmp.eq.s32.totalorder %s28, 1
      %p184 = por %p182, %p183
      %p185 = scmp.ne.s32.totalorder %s176, %s177
      %p186 = scmp.eq.s32.totalorder %s28, 0
      %p187 = por %p185, %p186
      %p188 = scmp.ne.s32.totalorder %s176, %s177
      %p189 = scmp.eq.s32.totalorder %s29, 1
      %p190 = por %p188, %p189
      %p192 = scmp.ne.s32.totalorder %s177, %s191
      %p193 = scmp.eq.s32.totalorder %s29, 0
      %p194 = por %p192, %p193
      %s196 = sadd.s32 %s195, 1
      %p199 = scmp.eq.s32.totalorder %s23, 1
      %p200 = scmp.ne.s32.totalorder %s195, %s197
      %p201 = scmp.eq.s32.totalorder %s23, 0
      %p202 = por %p200, %p201
      %p203 = scmp.ne.s32.totalorder %s195, %s197
      %p204 = scmp.eq.s32.totalorder %s28, 1
      %p205 = por %p203, %p204
      %p206 = scmp.ne.s32.totalorder %s197, %s198
      %p207 = scmp.eq.s32.totalorder %s28, 0
      %p208 = por %p206, %p207
      %p209 = scmp.ne.s32.totalorder %s197, %s198
      %p210 = scmp.eq.s32.totalorder %s29, 1
      %p211 = por %p209, %p210
      %p213 = scmp.ne.s32.totalorder %s198, %s212
      %p214 = scmp.eq.s32.totalorder %s29, 0
      %p215 = por %p213, %p214
      %s217 = sadd.s32 %s216, 1
      %p220 = scmp.eq.s32.totalorder %s23, 1
      %p221 = scmp.ne.s32.totalorder %s216, %s218
      %p222 = scmp.eq.s32.totalorder %s23, 0
      %p223 = por %p221, %p222
      %p224 = scmp.ne.s32.totalorder %s216, %s218
      %p225 = scmp.eq.s32.totalorder %s28, 1
      %p226 = por %p224, %p225
      %p227 = scmp.ne.s32.totalorder %s218, %s219
      %p228 = scmp.eq.s32.totalorder %s28, 0
      %p229 = por %p227, %p228
      %p230 = scmp.ne.s32.totalorder %s218, %s219
      %p231 = scmp.eq.s32.totalorder %s29, 1
      %p232 = por %p230, %p231
      %p234 = scmp.ne.s32.totalorder %s219, %s233
      %p235 = scmp.eq.s32.totalorder %s29, 0
      %p236 = por %p234, %p235
      %s237 = ssub.s32 %s30, %s42
      %s238 = ssub.s32 %s31, %s38
      %s239 = sor.u32 %s237, %s238
      %p240 = scmp.eq.s32.totalorder %s239, 0
      %s242 = sadd.s32 %s241, 1
      %s243 = scalar_select %p240, %s241, %s242
      %p246 = pneg %p240
      %p247 = scmp.eq.s32.totalorder %s23, 1
      %p248 = por %p246, %p247
      %p249 = scmp.ne.s32.totalorder %s241, %s244
      %p250 = scmp.eq.s32.totalorder %s23, 0
      %p251 = por %p249, %p250
      %p252 = scmp.ne.s32.totalorder %s241, %s244
      %p253 = scmp.eq.s32.totalorder %s28, 1
      %p254 = por %p252, %p253
      %p255 = scmp.ne.s32.totalorder %s244, %s245
      %p256 = scmp.eq.s32.totalorder %s28, 0
      %p257 = por %p255, %p256
      %p258 = scmp.ne.s32.totalorder %s244, %s245
      %p259 = scmp.eq.s32.totalorder %s29, 1
      %p260 = por %p258, %p259
      %p262 = scmp.ne.s32.totalorder %s245, %s261
      %p263 = scmp.eq.s32.totalorder %s29, 0
      %p264 = por %p262, %p263
      %p265 = scmp.le.s32.totalorder 1, %s23
      %p266 = scmp.lt.s32.totalorder %s23, 3
      %p267 = pnand %p265, %p266
      %p268 = pneg %p267
      // Predicated region
      $region9: #{tpu_custom_call.1} parent=5 // pred_check
        _
      $region10: #{tpu_custom_call.1} parent=5 // pred_check_branch
        %270 = sbr.rel (%p267) target = $region12
      $region11: #{tpu_custom_call.1} parent=5 // pred_region
        %s271 = ssub.s32 %s23, 1
        // Predicated region
        $region13: #{tpu_custom_call.1} parent=11 // pred_check
          %p272 = pneg %p82
        $region14: #{tpu_custom_call.1} parent=11 // pred_check_branch
          %274 = sbr.rel (%p272) target = $region16
        $region15: #{tpu_custom_call.1} parent=11 // pred_region
          %276 = vsyncadd [#allocation9], 0
          %s277 = sshll.u32 %s1, 4
          %s278 = int_to_ptr.hbm [resolvable:$true] %s277
          %s279 = sshll.u32 [#allocation8], 4
          %s280 = int_to_ptr.vmem [resolvable:$true] %s279
          %285 = dma.hbm_to_vmem [thread:$0]  %s278, 256, %s280, [#allocation9], 64, 64, 4
        $region16: #{tpu_custom_call.1} parent=11 // pred_fallthru
          _
        // Predicated region
        $region17: #{tpu_custom_call.1} parent=11 // pred_check
          %p286 = pneg %p103
        $region18: #{tpu_custom_call.1} parent=11 // pred_check_branch
          %288 = sbr.rel (%p286) target = $region20
        $region19: #{tpu_custom_call.1} parent=11 // pred_region
          %290 = vsyncadd [#allocation9], 0
          %s291 = sshll.u32 %s2, 4
          %s292 = int_to_ptr.hbm [resolvable:$true] %s291
          %s293 = sshll.u32 [#allocation10], 4
          %s294 = int_to_ptr.vmem [resolvable:$true] %s293
          %299 = dma.hbm_to_vmem [thread:$0]  %s292, 256, %s294, [#allocation9], 64, 64, 4
        $region20: #{tpu_custom_call.1} parent=11 // pred_fallthru
          _
        // Predicated region
        $region21: #{tpu_custom_call.1} parent=11 // pred_check
          %p300 = pneg %p124
        $region22: #{tpu_custom_call.1} parent=11 // pred_check_branch
          %302 = sbr.rel (%p300) target = $region24
        $region23: #{tpu_custom_call.1} parent=11 // pred_region
          _
        $region24: #{tpu_custom_call.1} parent=11 // pred_fallthru
          _
        // Predicated region
        $region25: #{tpu_custom_call.1} parent=11 // pred_check
          %p303 = pneg %p145
        $region26: #{tpu_custom_call.1} parent=11 // pred_check_branch
          %305 = sbr.rel (%p303) target = $region28
        $region27: #{tpu_custom_call.1} parent=11 // pred_region
          _
        $region28: #{tpu_custom_call.1} parent=11 // pred_fallthru
          _
        // Predicated region
        $region29: #{tpu_custom_call.1} parent=11 // pred_check
          %p306 = pneg %p166
        $region30: #{tpu_custom_call.1} parent=11 // pred_check_branch
          %308 = sbr.rel (%p306) target = $region32
        $region31: #{tpu_custom_call.1} parent=11 // pred_region
          %310 = vsyncadd [#allocation12], 0
          %s311 = sshll.u32 %s5, 4
          %s312 = int_to_ptr.hbm [resolvable:$true] %s311
          %s313 = sshll.u32 [#allocation11], 4
          %s314 = int_to_ptr.vmem [resolvable:$true] %s313
          %319 = dma.hbm_to_vmem [thread:$0]  %s312, 256, %s314, [#allocation12], 64, 64, 4
        $region32: #{tpu_custom_call.1} parent=11 // pred_fallthru
          _
        // Predicated region
        $region33: #{tpu_custom_call.1} parent=11 // pred_check
          %p320 = pneg %p187
        $region34: #{tpu_custom_call.1} parent=11 // pred_check_branch
          %322 = sbr.rel (%p320) target = $region36
        $region35: #{tpu_custom_call.1} parent=11 // pred_region
          _
        $region36: #{tpu_custom_call.1} parent=11 // pred_fallthru
          _
        // Predicated region
        $region37: #{tpu_custom_call.1} parent=11 // pred_check
          %p323 = pneg %p208
        $region38: #{tpu_custom_call.1} parent=11 // pred_check_branch
          %325 = sbr.rel (%p323) target = $region40
        $region39: #{tpu_custom_call.1} parent=11 // pred_region
          _
        $region40: #{tpu_custom_call.1} parent=11 // pred_fallthru
          _
        // Predicated region
        $region41: #{tpu_custom_call.1} parent=11 // pred_check
          %p326 = pneg %p229
        $region42: #{tpu_custom_call.1} parent=11 // pred_check_branch
          %328 = sbr.rel (%p326) target = $region44
        $region43: #{tpu_custom_call.1} parent=11 // pred_region
          _
        $region44: #{tpu_custom_call.1} parent=11 // pred_fallthru
          _
      $region12: #{tpu_custom_call.1} parent=5 // pred_fallthru
        _
      %p329 = scmp.lt.s32.totalorder %s23, 2
      // Predicated region
      $region45: #{tpu_custom_call.1} parent=5 // pred_check
        %p330 = pneg %p329
      $region46: #{tpu_custom_call.1} parent=5 // pred_check_branch
        %332 = sbr.rel (%p330) target = $region48
      $region47: #{tpu_custom_call.1} parent=5 // pred_region
        // Predicated region
        $region49: #{tpu_custom_call.1} parent=47 // pred_check
          %p333 = pneg %p55
        $region50: #{tpu_custom_call.1} parent=47 // pred_check_branch
          %335 = sbr.rel (%p333) target = $region52
        $region51: #{tpu_custom_call.1} parent=47 // pred_region
          %s336 = sand.u32 %s45, 1
          %s337 = scalar_lea.sflag [#allocation6], %s336
          %s338 = sand.u32 %s45, 1
          %s339 = smul.addr %s338, 8
          %s340 = scalar_lea.vmem [#allocation5], %s339
          %342 = vsyncadd %s337, 0
          %s343 = smul.addr %s30, 8
          %s344 = scalar_lea.hbm %s0, %s343
          %s346 = sshll.u32 %s344, 4
          %s347 = int_to_ptr.hbm [resolvable:$true] %s346
          %s348 = sshll.u32 %s340, 4
          %s349 = int_to_ptr.vmem [resolvable:$true] %s348
          %351 = dma.hbm_to_vmem [thread:$0]  %s347, 128, %s349, %s337
        $region52: #{tpu_custom_call.1} parent=47 // pred_fallthru
          _
      $region48: #{tpu_custom_call.1} parent=5 // pred_fallthru
        _
      %p352 = scmp.le.s32.totalorder 1, %s23
      %p353 = scmp.lt.s32.totalorder %s23, 3
      %p354 = pnand %p352, %p353
      %p355 = pneg %p354
      // Predicated region
      $region53: #{tpu_custom_call.1} parent=5 // pred_check
        _
      $region54: #{tpu_custom_call.1} parent=5 // pred_check_branch
        %357 = sbr.rel (%p354) target = $region56
      $region55: #{tpu_custom_call.1} parent=5 // pred_region
        %s358 = ssub.s32 %s23, 1
        %s359 = sand.u32 %s48, 1
        %s360 = scalar_lea.sflag [#allocation6], %s359
        %s361 = sand.u32 %s48, 1
        %s362 = smul.addr %s361, 8
        %s363 = scalar_lea.vmem [#allocation5], %s362
        // Predicated region
        $region57: #{tpu_custom_call.1} parent=55 // pred_check
          %p364 = pneg %p61
        $region58: #{tpu_custom_call.1} parent=55 // pred_check_branch
          %366 = sbr.rel (%p364) target = $region60
        $region59: #{tpu_custom_call.1} parent=55 // pred_region
          %368 = dma.done %s360, 128
        $region60: #{tpu_custom_call.1} parent=55 // pred_fallthru
          _
        // Predicated region
        $region61: #{tpu_custom_call.1} parent=55 // pred_check
          %p369 = pneg %p82
        $region62: #{tpu_custom_call.1} parent=55 // pred_check_branch
          %371 = sbr.rel (%p369) target = $region64
        $region63: #{tpu_custom_call.1} parent=55 // pred_region
          %373 = dma.done [#allocation9], 256
        $region64: #{tpu_custom_call.1} parent=55 // pred_fallthru
          _
        // Predicated region
        $region65: #{tpu_custom_call.1} parent=55 // pred_check
          %p374 = pneg %p103
        $region66: #{tpu_custom_call.1} parent=55 // pred_check_branch
          %376 = sbr.rel (%p374) target = $region68
        $region67: #{tpu_custom_call.1} parent=55 // pred_region
          %378 = dma.done [#allocation9], 256
        $region68: #{tpu_custom_call.1} parent=55 // pred_fallthru
          _
        // Predicated region
        $region69: #{tpu_custom_call.1} parent=55 // pred_check
          %p379 = pneg %p166
        $region70: #{tpu_custom_call.1} parent=55 // pred_check_branch
          %381 = sbr.rel (%p379) target = $region72
        $region71: #{tpu_custom_call.1} parent=55 // pred_region
          %383 = dma.done [#allocation12], 256
        $region72: #{tpu_custom_call.1} parent=55 // pred_fallthru
          _
        %s384 = sand.u32 %s48, 1
        %s385 = scalar_lea.sflag [#allocation6], %s384
        %s386 = sand.u32 %s48, 1
        %s387 = smul.addr %s386, 8
        %s388 = scalar_lea.vmem [#allocation5], %s387
        %p389 = pneg %p61
        %p390 = pneg %p58
        %p391 = pneg %p82
        %p392 = pneg %p79
        %p393 = pneg %p103
        %p394 = pneg %p100
        %p395 = pneg %p124
        %p396 = pneg %p121
        %p397 = pneg %p145
        %p398 = pneg %p142
        %p399 = pneg %p166
        %p400 = pneg %p163
        %p401 = pneg %p187
        %p402 = pneg %p184
        %p403 = pneg %p208
        %p404 = pneg %p205
        %p405 = pneg %p229
        %p406 = pneg %p226
        %p407 = pneg %p257
        %p408 = pneg %p254
        %s409 = sand.u32 %s244, 1
        %s410 = scalar_lea.sflag [#allocation7], %s409
        %s411 = sand.u32 %s244, 1
        %s412 = smul.addr %s411, 8
        %s413 = scalar_lea.vmem [#allocation13], %s412
        %p415 = scmp.eq.s32.totalorder %s33, 0
        // Predicated region
        $region73: #{tpu_custom_call.1} parent=55 // pred_check
          %p416 = pneg %p415
        $region74: #{tpu_custom_call.1} parent=55 // pred_check_branch
          %418 = sbr.rel (%p416) target = $region76
        $region75: #{tpu_custom_call.1} parent=55 // pred_region
          %v419 = vld [vmem:[%s363] sm:$0xff]
          %v420 = vpack.c.bf16 %v419, %v419
          %v421 = vld [vmem:[#allocation10] sm:$0xf]
          %v422 = vld [vmem:[#allocation10 + $0x4] sm:$0xf]
          %v423 = vld [vmem:[#allocation10 + $0x8] sm:$0xf]
          %v424 = vld [vmem:[#allocation10 + $0xc] sm:$0xf]
          %v425 = vld [vmem:[%s4] sm:$0x1]
          %v427 = vperm.slane %v425, 0
          %v433 = vunpack.c.l.b16 %v421
          %v434 = vunpack.c.l.b16 %v422
          %v435 = vunpack.c.l.b16 %v423
          %v436 = vunpack.c.l.b16 %v424
          %v437 = vpack.c.b16 %v434, %v433
          %v438 = vpack.c.b16 %v436, %v435
          %vm441 = vcmask 261120
          %v443 = vsel %vm441, %v420, 0
          %445 = vmatpush.bf16.msra.mxu0 0
          %446 = vmatpush.bf16.msra.mxu0 0
          %447 = vmatpush.bf16.msra.mxu0 0
          %448 = vmatpush.bf16.msra.mxu0 0
          %449 = vmatpush.bf16.msra.mxu0 0
          %450 = vmatpush.bf16.msra.mxu0 0
          %451 = vmatpush.bf16.msra.mxu0 %v438
          %452 = vmatpush.bf16.msra.mxu0 %v437
          %453 = vmatmul.bf16.gmra.mxu0 %v443
          %v454 = vpop.f32.mrf.mxu0
          %v455 = vadd.f32 %v427, %v454
          %v456 = vpop.f32.mrf.mxu0
          %457 = vdwg.mxu0
          %v458 = vpack.c.bf16 %v455, %v455
          %459 = vxpose.xlu0.c.b16.start [1/8] %v458, 128
          %460 = vxpose.xlu0.c.b16.cont [2/8] 0, 128
          %461 = vxpose.xlu0.c.b16.cont [3/8] 0, 128
          %462 = vxpose.xlu0.c.b16.cont [4/8] 0, 128
          %463 = vxpose.xlu0.c.b16.cont [5/8] 0, 128
          %464 = vxpose.xlu0.c.b16.cont [6/8] 0, 128
          %465 = vxpose.xlu0.c.b16.cont [7/8] 0, 128
          %466 = vxpose.xlu0.c.b16.end [8/8] 0, 128
          %v467 = vpop.trf.xlu0
          %v468 = vpop.trf.xlu0
          %v469 = vpop.trf.xlu0
          %v470 = vpop.trf.xlu0
          %v471 = vpop.trf.xlu0
          %v472 = vpop.trf.xlu0
          %v473 = vpop.trf.xlu0
          %v474 = vpop.trf.xlu0
          %v477 = vunpack.c.l.b16 %v467
          %v478 = vunpack.c.h.b16 %v467
          %v479 = vunpack.c.l.b16 %v468
          %v480 = vunpack.c.h.b16 %v468
          %v481 = vpack.c.b16 %v477, %v477
          %v482 = vpack.c.b16 %v478, %v478
          %v483 = vpack.c.b16 %v479, %v479
          %v484 = vpack.c.b16 %v480, %v480
          %vm489 = vcmask 60416
          %490 = vst.msk [vmem:[#allocation2] sm:$0xf] %vm489, %v481
          %491 = vst.msk [vmem:[#allocation2 + $0x4] sm:$0xf] %vm489, %v482
          %492 = vst.msk [vmem:[#allocation2 + $0x8] sm:$0xf] %vm489, %v483
          %493 = vst.msk [vmem:[#allocation2 + $0xc] sm:$0xf] %vm489, %v484
          %495 = vrot.lane.b32.xlu0 %v458, 96
          %v496 = vpop.permute.xlu0 %495
          %vm498 = vcmask 257024
          %499 = vst.msk [vmem:[#allocation3] sm:$0xf] %vm498, %v496
        $region76: #{tpu_custom_call.1} parent=55 // pred_fallthru
          _
        %s500 = smul.u32 %s33, 8
        %s501 = scalar_lea.vmem %s363, %s500 [#allocation5]
        %v502 = vld [vmem:[%s501] sm:$0xff]
        %v503 = vpack.c.bf16 %v502, %v502
        %v504 = vld [vmem:[#allocation8] sm:$0xf]
        %v505 = vld [vmem:[#allocation8 + $0x4] sm:$0xf]
        %v506 = vld [vmem:[#allocation8 + $0x8] sm:$0xf]
        %v507 = vld [vmem:[#allocation8 + $0xc] sm:$0xf]
        %v508 = vld [vmem:[%s3] sm:$0x1]
        %v510 = vperm.slane %v508, 0
        %v516 = vunpack.c.l.b16 %v504
        %v517 = vunpack.c.l.b16 %v505
        %v518 = vunpack.c.l.b16 %v506
        %v519 = vunpack.c.l.b16 %v507
        %v520 = vpack.c.b16 %v517, %v516
        %v521 = vpack.c.b16 %v519, %v518
        %vm524 = vcmask 261120
        %v526 = vsel %vm524, %v503, 0
        %528 = vmatpush.bf16.msra.mxu0 0
        %529 = vmatpush.bf16.msra.mxu0 0
        %530 = vmatpush.bf16.msra.mxu0 0
        %531 = vmatpush.bf16.msra.mxu0 0
        %532 = vmatpush.bf16.msra.mxu0 0
        %533 = vmatpush.bf16.msra.mxu0 0
        %534 = vmatpush.bf16.msra.mxu0 %v521
        %535 = vmatpush.bf16.msra.mxu0 %v520
        %536 = vmatmul.bf16.gmra.mxu0 %v526
        %v537 = vpop.f32.mrf.mxu0
        %v538 = vadd.f32 %v510, %v537
        %v539 = vpop.f32.mrf.mxu0
        %540 = vdwg.mxu0
        %v541 = vpack.c.bf16 %v538, %v538
        %v542 = vld [vmem:[#allocation2] sm:$0xf]
        %vm543 = vcmask 64512
        %v545 = vsel %vm543, %v541, 0
        %vm547 = vcmask 1043456
        %v549 = vsel %vm547, %v542, 0
        %551 = vmatpush.bf16.msra.mxu0 0
        %552 = vmatpush.bf16.msra.mxu0 0
        %553 = vmatpush.bf16.msra.mxu0 0
        %554 = vmatpush.bf16.msra.mxu0 0
        %555 = vmatpush.bf16.msra.mxu0 0
        %556 = vmatpush.bf16.msra.mxu0 0
        %557 = vmatpush.bf16.msra.mxu0 0
        %558 = vmatpush.bf16.msra.mxu0 %v549
        %559 = vmatmul.bf16.gmra.mxu0 %v545
        %v560 = vpop.f32.mrf.mxu0
        %v561 = vadd.f32 0.0, %v560
        %v562 = vpop.f32.mrf.mxu0
        %563 = vdwg.mxu0
        %v564 = vsel %vm543, %v561, -inf
        %565 = vmax.xlane.f32.xlu0 %v564
        %v566 = vpop.xlane.xlu0 %565
        %v567 = vsub.f32 %v561, %v566
        %v568 = vmul.f32 %v567, 1.442695
        %v569 = vpow.pop %v568
        %v570 = vsel %vm543, %v569, 0.0
        %571 = vadd.xlane.f32.xlu0 %v570
        %v572 = vpop.xlane.xlu0 %571
        %v573 = vld [vmem:[#allocation3] sm:$0xf]
        %v574 = vpack.c.bf16 %v569, %v569
        %v576 = vsel %vm543, %v574, 0
        %v579 = vsel %vm547, %v573, 0
        %581 = vmatpush.bf16.msra.mxu0 0
        %582 = vmatpush.bf16.msra.mxu0 0
        %583 = vmatpush.bf16.msra.mxu0 0
        %584 = vmatpush.bf16.msra.mxu0 0
        %585 = vmatpush.bf16.msra.mxu0 0
        %586 = vmatpush.bf16.msra.mxu0 0
        %587 = vmatpush.bf16.msra.mxu0 0
        %588 = vmatpush.bf16.msra.mxu0 %v579
        %589 = vmatmul.bf16.gmra.mxu0 %v576
        %v590 = vpop.f32.mrf.mxu0
        %v591 = vadd.f32 0.0, %v590
        %v592 = vpop.f32.mrf.mxu0
        %593 = vdwg.mxu0
        %v594 = vrcp.pop %v572
        %v595 = vmul.f32 %v572, %v594
        %v596 = vsub.f32 1.0, %v595
        %v597 = vmul.f32 %v594, %v596
        %v598 = vadd.f32 %v594, %v597
        %vm599 = vweird.f32 %v572
        %vm600 = vweird.f32 %v594
        %vm601 = vmor %vm599, %vm600
        %v602 = vsel %vm601, %v594, %v598
        %v603 = vand.u32 2147483647, %v572
        %vm604 = vcmp.eq.f32.partialorder %v603, 8.507059e+37
        %v605 = vand.u32 %v572, 2147483648
        %v606 = vor.u32 1.1754944e-38, %v605
        %v607 = vsel %vm604, %v606, %v602
        %v608 = vmul.f32 %v591, %v607
        %v609 = vpack.c.bf16 %v608, %v608
        %vm610 = vcmask 60416
        %611 = vst.msk [vmem:[#allocation4] sm:$0xf] %vm610, %v609
        %v612 = vld [vmem:[#allocation2 + $0x4] sm:$0xf]
        %614 = vrot.lane.b32.xlu0 %v541, 120
        %v615 = vpop.permute.xlu0 %614
        %v617 = vsel %vm543, %v615, 0
        %v620 = vsel %vm547, %v612, 0
        %622 = vmatpush.bf16.msra.mxu0 0
        %623 = vmatpush.bf16.msra.mxu0 0
        %624 = vmatpush.bf16.msra.mxu0 0
        %625 = vmatpush.bf16.msra.mxu0 0
        %626 = vmatpush.bf16.msra.mxu0 0
        %627 = vmatpush.bf16.msra.mxu0 0
        %628 = vmatpush.bf16.msra.mxu0 0
        %629 = vmatpush.bf16.msra.mxu0 %v620
        %630 = vmatmul.bf16.gmra.mxu0 %v617
        %v631 = vpop.f32.mrf.mxu0
        %v632 = vadd.f32 0.0, %v631
        %v633 = vpop.f32.mrf.mxu0
        %634 = vdwg.mxu0
        %v635 = vsel %vm543, %v632, -inf
        %636 = vmax.xlane.f32.xlu0 %v635
        %v637 = vpop.xlane.xlu0 %636
        %v638 = vsub.f32 %v632, %v637
        %v639 = vmul.f32 %v638, 1.442695
        %v640 = vpow.pop %v639
        %v641 = vsel %vm543, %v640, 0.0
        %642 = vadd.xlane.f32.xlu0 %v641
        %v643 = vpop.xlane.xlu0 %642
        %v644 = vld [vmem:[#allocation3] sm:$0xf]
        %v645 = vpack.c.bf16 %v640, %v640
        %v647 = vunpack.c.l.b16 %v644
        %v648 = vpack.c.b16 %v647, %v647
        %649 = vrot.lane.b32.xlu0 %v648, 120
        %v650 = vpop.permute.xlu0 %649
        %v652 = vsel %vm543, %v645, 0
        %v655 = vsel %vm547, %v650, 0
        %657 = vmatpush.bf16.msra.mxu0 0
        %658 = vmatpush.bf16.msra.mxu0 0
        %659 = vmatpush.bf16.msra.mxu0 0
        %660 = vmatpush.bf16.msra.mxu0 0
        %661 = vmatpush.bf16.msra.mxu0 0
        %662 = vmatpush.bf16.msra.mxu0 0
        %663 = vmatpush.bf16.msra.mxu0 0
        %664 = vmatpush.bf16.msra.mxu0 %v655
        %665 = vmatmul.bf16.gmra.mxu0 %v652
        %v666 = vpop.f32.mrf.mxu0
        %v667 = vadd.f32 0.0, %v666
        %v668 = vpop.f32.mrf.mxu0
        %669 = vdwg.mxu0
        %v670 = vrcp.pop %v643
        %v671 = vmul.f32 %v643, %v670
        %v672 = vsub.f32 1.0, %v671
        %v673 = vmul.f32 %v670, %v672
        %v674 = vadd.f32 %v670, %v673
        %vm675 = vweird.f32 %v643
        %vm676 = vweird.f32 %v670
        %vm677 = vmor %vm675, %vm676
        %v678 = vsel %vm677, %v670, %v674
        %v679 = vand.u32 2147483647, %v643
        %vm680 = vcmp.eq.f32.partialorder %v679, 8.507059e+37
        %v681 = vand.u32 %v643, 2147483648
        %v682 = vor.u32 1.1754944e-38, %v681
        %v683 = vsel %vm680, %v682, %v678
        %v684 = vmul.f32 %v667, %v683
        %v685 = vpack.c.bf16 %v684, %v684
        %687 = vrot.lane.b32.xlu0 %v685, 8
        %v688 = vpop.permute.xlu0 %687
        %vm690 = vcmask 126016
        %691 = vst.msk [vmem:[#allocation4] sm:$0xf] %vm690, %v688
        %v692 = vld [vmem:[#allocation2 + $0x8] sm:$0xf]
        %693 = vrot.lane.b32.xlu0 %v541, 112
        %v694 = vpop.permute.xlu0 %693
        %v696 = vsel %vm543, %v694, 0
        %v699 = vsel %vm547, %v692, 0
        %701 = vmatpush.bf16.msra.mxu0 0
        %702 = vmatpush.bf16.msra.mxu0 0
        %703 = vmatpush.bf16.msra.mxu0 0
        %704 = vmatpush.bf16.msra.mxu0 0
        %705 = vmatpush.bf16.msra.mxu0 0
        %706 = vmatpush.bf16.msra.mxu0 0
        %707 = vmatpush.bf16.msra.mxu0 0
        %708 = vmatpush.bf16.msra.mxu0 %v699
        %709 = vmatmul.bf16.gmra.mxu0 %v696
        %v710 = vpop.f32.mrf.mxu0
        %v711 = vadd.f32 0.0, %v710
        %v712 = vpop.f32.mrf.mxu0
        %713 = vdwg.mxu0
        %v714 = vsel %vm543, %v711, -inf
        %715 = vmax.xlane.f32.xlu0 %v714
        %v716 = vpop.xlane.xlu0 %715
        %v717 = vsub.f32 %v711, %v716
        %v718 = vmul.f32 %v717, 1.442695
        %v719 = vpow.pop %v718
        %v720 = vsel %vm543, %v719, 0.0
        %721 = vadd.xlane.f32.xlu0 %v720
        %v722 = vpop.xlane.xlu0 %721
        %v723 = vld [vmem:[#allocation3] sm:$0xf]
        %v724 = vpack.c.bf16 %v719, %v719
        %v726 = vunpack.c.l.b16 %v723
        %v727 = vpack.c.b16 %v726, %v726
        %728 = vrot.lane.b32.xlu0 %v727, 112
        %v729 = vpop.permute.xlu0 %728
        %v731 = vsel %vm543, %v724, 0
        %v734 = vsel %vm547, %v729, 0
        %736 = vmatpush.bf16.msra.mxu0 0
        %737 = vmatpush.bf16.msra.mxu0 0
        %738 = vmatpush.bf16.msra.mxu0 0
        %739 = vmatpush.bf16.msra.mxu0 0
        %740 = vmatpush.bf16.msra.mxu0 0
        %741 = vmatpush.bf16.msra.mxu0 0
        %742 = vmatpush.bf16.msra.mxu0 0
        %743 = vmatpush.bf16.msra.mxu0 %v734
        %744 = vmatmul.bf16.gmra.mxu0 %v731
        %v745 = vpop.f32.mrf.mxu0
        %v746 = vadd.f32 0.0, %v745
        %v747 = vpop.f32.mrf.mxu0
        %748 = vdwg.mxu0
        %v749 = vrcp.pop %v722
        %v750 = vmul.f32 %v722, %v749
        %v751 = vsub.f32 1.0, %v750
        %v752 = vmul.f32 %v749, %v751
        %v753 = vadd.f32 %v749, %v752
        %vm754 = vweird.f32 %v722
        %vm755 = vweird.f32 %v749
        %vm756 = vmor %vm754, %vm755
        %v757 = vsel %vm756, %v749, %v753
        %v758 = vand.u32 2147483647, %v722
        %vm759 = vcmp.eq.f32.partialorder %v758, 8.507059e+37
        %v760 = vand.u32 %v722, 2147483648
        %v761 = vor.u32 1.1754944e-38, %v760
        %v762 = vsel %vm759, %v761, %v757
        %v763 = vmul.f32 %v746, %v762
        %v764 = vpack.c.bf16 %v763, %v763
        %766 = vrot.lane.b32.xlu0 %v764, 16
        %v767 = vpop.permute.xlu0 %766
        %vm769 = vcmask 191616
        %770 = vst.msk [vmem:[#allocation4] sm:$0xf] %vm769, %v767
        %v771 = vld [vmem:[#allocation2 + $0xc] sm:$0xf]
        %772 = vrot.lane.b32.xlu0 %v541, 104
        %v773 = vpop.permute.xlu0 %772
        %v775 = vsel %vm543, %v773, 0
        %v778 = vsel %vm547, %v771, 0
        %780 = vmatpush.bf16.msra.mxu0 0
        %781 = vmatpush.bf16.msra.mxu0 0
        %782 = vmatpush.bf16.msra.mxu0 0
        %783 = vmatpush.bf16.msra.mxu0 0
        %784 = vmatpush.bf16.msra.mxu0 0
        %785 = vmatpush.bf16.msra.mxu0 0
        %786 = vmatpush.bf16.msra.mxu0 0
        %787 = vmatpush.bf16.msra.mxu0 %v778
        %788 = vmatmul.bf16.gmra.mxu0 %v775
        %v789 = vpop.f32.mrf.mxu0
        %v790 = vadd.f32 0.0, %v789
        %v791 = vpop.f32.mrf.mxu0
        %792 = vdwg.mxu0
        %v793 = vsel %vm543, %v790, -inf
        %794 = vmax.xlane.f32.xlu0 %v793
        %v795 = vpop.xlane.xlu0 %794
        %v796 = vsub.f32 %v790, %v795
        %v797 = vmul.f32 %v796, 1.442695
        %v798 = vpow.pop %v797
        %v799 = vsel %vm543, %v798, 0.0
        %800 = vadd.xlane.f32.xlu0 %v799
        %v801 = vpop.xlane.xlu0 %800
        %v802 = vld [vmem:[#allocation3] sm:$0xf]
        %v803 = vpack.c.bf16 %v798, %v798
        %v805 = vunpack.c.l.b16 %v802
        %v806 = vpack.c.b16 %v805, %v805
        %807 = vrot.lane.b32.xlu0 %v806, 104
        %v808 = vpop.permute.xlu0 %807
        %v810 = vsel %vm543, %v803, 0
        %v813 = vsel %vm547, %v808, 0
        %815 = vmatpush.bf16.msra.mxu0 0
        %816 = vmatpush.bf16.msra.mxu0 0
        %817 = vmatpush.bf16.msra.mxu0 0
        %818 = vmatpush.bf16.msra.mxu0 0
        %819 = vmatpush.bf16.msra.mxu0 0
        %820 = vmatpush.bf16.msra.mxu0 0
        %821 = vmatpush.bf16.msra.mxu0 0
        %822 = vmatpush.bf16.msra.mxu0 %v813
        %823 = vmatmul.bf16.gmra.mxu0 %v810
        %v824 = vpop.f32.mrf.mxu0
        %v825 = vadd.f32 0.0, %v824
        %v826 = vpop.f32.mrf.mxu0
        %827 = vdwg.mxu0
        %v828 = vrcp.pop %v801
        %v829 = vmul.f32 %v801, %v828
        %v830 = vsub.f32 1.0, %v829
        %v831 = vmul.f32 %v828, %v830
        %v832 = vadd.f32 %v828, %v831
        %vm833 = vweird.f32 %v801
        %vm834 = vweird.f32 %v828
        %vm835 = vmor %vm833, %vm834
        %v836 = vsel %vm835, %v828, %v832
        %v837 = vand.u32 2147483647, %v801
        %vm838 = vcmp.eq.f32.partialorder %v837, 8.507059e+37
        %v839 = vand.u32 %v801, 2147483648
        %v840 = vor.u32 1.1754944e-38, %v839
        %v841 = vsel %vm838, %v840, %v836
        %v842 = vmul.f32 %v825, %v841
        %v843 = vpack.c.bf16 %v842, %v842
        %845 = vrot.lane.b32.xlu0 %v843, 24
        %v846 = vpop.permute.xlu0 %845
        %vm848 = vcmask 257216
        %849 = vst.msk [vmem:[#allocation4] sm:$0xf] %vm848, %v846
        %v850 = vld [vmem:[#allocation4] sm:$0xf]
        %v851 = vld [vmem:[#allocation11] sm:$0xf]
        %v852 = vld [vmem:[#allocation11 + $0x4] sm:$0xf]
        %v853 = vld [vmem:[#allocation11 + $0x8] sm:$0xf]
        %v854 = vld [vmem:[#allocation11 + $0xc] sm:$0xf]
        %v855 = vld [vmem:[%s6] sm:$0x1]
        %v857 = vperm.slane %v855, 0
        %v863 = vunpack.c.l.b16 %v851
        %v864 = vunpack.c.l.b16 %v852
        %v865 = vunpack.c.l.b16 %v853
        %v866 = vunpack.c.l.b16 %v854
        %v867 = vpack.c.b16 %v864, %v863
        %v868 = vpack.c.b16 %v866, %v865
        %v872 = vsel %vm524, %v850, 0
        %874 = vmatpush.bf16.msra.mxu0 0
        %875 = vmatpush.bf16.msra.mxu0 0
        %876 = vmatpush.bf16.msra.mxu0 0
        %877 = vmatpush.bf16.msra.mxu0 0
        %878 = vmatpush.bf16.msra.mxu0 0
        %879 = vmatpush.bf16.msra.mxu0 0
        %880 = vmatpush.bf16.msra.mxu0 %v868
        %881 = vmatpush.bf16.msra.mxu0 %v867
        %882 = vmatmul.bf16.gmra.mxu0 %v872
        %v883 = vpop.f32.mrf.mxu0
        %v884 = vadd.f32 %v857, %v883
        %v885 = vpop.f32.mrf.mxu0
        %886 = vdwg.mxu0
        %v887 = vadd.f32 %v502, %v884
        %v888 = vsel %vm524, %v887, 0.0
        %889 = vadd.xlane.f32.xlu0 %v888
        %v890 = vpop.xlane.xlu0 %889
        %v891 = vrcp.pop 32.0
        %v892 = vmul.f32 32.0, %v891
        %v893 = vsub.f32 1.0, %v892
        %v894 = vmul.f32 %v891, %v893
        %v895 = vadd.f32 %v891, %v894
        %vm896 = vweird.f32 %v891
        %v897 = vsel %vm896, %v891, %v895
        %v898 = vmul.f32 %v890, %v897
        %v899 = vsub.f32 %v887, %v898
        %v900 = vmul.f32 %v899, %v899
        %v901 = vsel %vm524, %v900, 0.0
        %902 = vadd.xlane.f32.xlu0 %v901
        %v903 = vpop.xlane.xlu0 %902
        %v904 = vmul.f32 %v903, %v897
        %v905 = vadd.f32 %v904, 1e-05
        %v906 = vrsqrt.pop %v905
        %v907 = vmul.f32 %v906, %v905
        %v908 = vmul.f32 %v907, %v906
        %v909 = vmul.f32 0.5, %v908
        %v910 = vsub.f32 1.5, %v909
        %v911 = vmul.f32 %v906, %v910
        %vm912 = vweird.f32 %v905
        %vm913 = vweird.f32 %v906
        %vm914 = vmor %vm912, %vm913
        %v915 = vsel %vm914, %v906, %v911
        %v916 = vmul.f32 %v899, %v915
        %v917 = vld [vmem:[%s7] sm:$0x1]
        %v919 = vperm.slane %v917, 0
        %v921 = vmul.f32 %v916, %v919
        %v922 = vld [vmem:[%s8] sm:$0x1]
        %v924 = vperm.slane %v922, 0
        %v926 = vadd.f32 %v921, %v924
        %927 = vst.msk [vmem:[%s413] sm:$0xff] %vm524, %v926
        %s928 = sand.u32 %s244, 1
        %s929 = scalar_lea.sflag [#allocation7], %s928
        %s930 = sand.u32 %s244, 1
        %s931 = smul.addr %s930, 8
        %s932 = scalar_lea.vmem [#allocation13], %s931
        // Predicated region
        $region77: #{tpu_custom_call.1} parent=55 // pred_check
          %p933 = pneg %p254
        $region78: #{tpu_custom_call.1} parent=55 // pred_check_branch
          %935 = sbr.rel (%p933) target = $region80
        $region79: #{tpu_custom_call.1} parent=55 // pred_region
          %937 = vsyncadd %s929, 0
          %s938 = sadd.s32 %s33, %s32
          %s939 = smul.addr %s938, 8
          %s940 = scalar_lea.hbm %s9, %s939
          %s942 = sshll.u32 %s932, 4
          %s943 = int_to_ptr.vmem [resolvable:$true] %s942
          %s944 = sshll.u32 %s940, 4
          %s945 = int_to_ptr.hbm [resolvable:$true] %s944
          %947 = dma.vmem_to_hbm [thread:$0]  %s943, 128, %s945, %s929
        $region80: #{tpu_custom_call.1} parent=55 // pred_fallthru
          _
      $region56: #{tpu_custom_call.1} parent=5 // pred_fallthru
        _
      %p948 = scmp.le.s32.totalorder 2, %s23
      // Predicated region
      $region81: #{tpu_custom_call.1} parent=5 // pred_check
        %p949 = pneg %p948
      $region82: #{tpu_custom_call.1} parent=5 // pred_check_branch
        %951 = sbr.rel (%p949) target = $region84
      $region83: #{tpu_custom_call.1} parent=5 // pred_region
        %s952 = ssub.s32 %s23, 2
        // Predicated region
        $region85: #{tpu_custom_call.1} parent=83 // pred_check
          %p953 = pneg %p260
        $region86: #{tpu_custom_call.1} parent=83 // pred_check_branch
          %955 = sbr.rel (%p953) target = $region88
        $region87: #{tpu_custom_call.1} parent=83 // pred_region
          %s956 = sand.u32 %s245, 1
          %s957 = scalar_lea.sflag [#allocation7], %s956
          %s958 = sand.u32 %s245, 1
          %s959 = smul.addr %s958, 8
          %s960 = scalar_lea.vmem [#allocation13], %s959
          %962 = dma.done %s957, 128
        $region88: #{tpu_custom_call.1} parent=83 // pred_fallthru
          _
      $region84: #{tpu_custom_call.1} parent=5 // pred_fallthru
        _
    $region6: #{tpu_custom_call.1} parent=1 // loop_footer
      %s27 = sadd.s32 1, %s23
    $region7: #{tpu_custom_call.1} parent=1 // loop_footer_branch
      %22 = sbr.rel target = $region3
    $region8: #{tpu_custom_call.1} parent=1 // loop_exit
      _
    %963 = vsyncpa [#allocation6], 1
    %s964 = scalar_lea.sflag [#allocation6], 1
    %965 = vsyncpa %s964, 1
    %966 = vsyncpa [#allocation9], 1
    %967 = vsyncpa [#allocation12], 1
    %968 = vsyncpa [#allocation7], 1
    %s969 = scalar_lea.sflag [#allocation7], 1
    %970 = vsyncpa %s969, 1

</llo_original>
